<compile_context>
chip_gen: v5e
topology: v5e:2x2
jax: 0.10.0
libtpu: 0.0.40
codegen_flags: <defaults>
</compile_context>

<pallas_src>
import functools
import math

import jax
import jax.numpy as jnp
from jax import lax
from jax.experimental import pallas as pl
from jax.experimental.pallas import tpu as pltpu


# ---------------------------------------------------------------------------
# Kernels
# ---------------------------------------------------------------------------
def _time_flat_kernel(num_mask, freq, static_fill, *refs):
    """Time masking on a lane-dense slab of the per-batch flattened (T*F,) signal.

    refs = (mask_pos, mask_len, [fill], spec, out); a time mask [pos, pos+len)
    becomes the flat interval [pos*F, (pos+len)*F).
    """
    if static_fill is None:
        mask_pos_ref, mask_len_ref, fill_ref, spec_ref, out_ref = refs
    else:
        mask_pos_ref, mask_len_ref, spec_ref, out_ref = refs
    b = pl.program_id(0)
    t = pl.program_id(1)
    rows, lanes = spec_ref.shape
    base = t * (rows * lanes)            # flat element offset of this tile (batch b)
    tile_hi = base + rows * lanes

    # ---- scalar skip test (SMEM / sreg only) ----
    starts, stops = [], []
    hit = None
    for m in range(num_mask):            # num_mask is tiny & static -> unrolled
        s = mask_pos_ref[b, m] * freq
        e = s + mask_len_ref[b, m] * freq
        starts.append(s)
        stops.append(e)
        h = jnp.logical_and(s < tile_hi, e > base)
        hit = h if hit is None else jnp.logical_or(hit, h)

    @pl.when(jnp.logical_not(hit))
    def _copy():                         # untouched tile: pure VMEM copy
        out_ref[...] = spec_ref[...]

    @pl.when(hit)
    def _masked():
        lane = lax.broadcasted_iota(jnp.int32, (1, lanes), 1)
        row_off = base + lax.broadcasted_iota(jnp.int32, (rows, 1), 0) * lanes
        mask = None
        for m in range(num_mask):
            lo = starts[m] - row_off     # (rows, 1) thresholds
            hi = stops[m] - row_off
            cur = jnp.logical_and(lo <= lane, lane < hi)
            mask = cur if mask is None else jnp.logical_or(mask, cur)
        x = spec_ref[...]
        fill = fill_ref[0] if static_fill is None else static_fill
        out_ref[...] = jnp.where(mask, jnp.asarray(fill, x.dtype), x)


def _freq_flat_kernel(num_mask, static_fill, *refs):
    """Freq masking on a lane-dense (rows, k*F) slab; mask is a periodic (1, k*F)
    pattern built from the precomputed freq-index row `fidx` (= arange % F)."""
    if static_fill is None:
        mask_pos_ref, mask_len_ref, fill_ref, spec_ref, fidx_ref, out_ref = refs
    else:
        mask_pos_ref, mask_len_ref, spec_ref, fidx_ref, out_ref = refs
    b = pl.program_id(0)

    hit = None
    for m in range(num_mask):
        h = mask_len_ref[b, m] > 0
        hit = h if hit is None else jnp.logical_or(hit, h)

    @pl.when(jnp.logical_not(hit))
    def _copy():
        out_ref[...] = spec_ref[...]

    @pl.when(hit)
    def _masked():
        f_idx = fidx_ref[...]            # (1, lanes) int32, periodic freq index
        mask = None
        for m in range(num_mask):
            pos = mask_pos_ref[b, m]
            cur = jnp.logical_and(pos <= f_idx, f_idx < pos + mask_len_ref[b, m])
            mask = cur if mask is None else jnp.logical_or(mask, cur)
        x = spec_ref[...]
        fill = fill_ref[0] if static_fill is None else static_fill
        out_ref[...] = jnp.where(mask, jnp.asarray(fill, x.dtype), x)


def _tf_kernel(num_mask, dim, static_fill, *refs):
    """(T, F)-tiled masked fill; fallback when no lane-dense reshape exists."""
    if static_fill is None:
        mask_pos_ref, mask_len_ref, fill_ref, spec_ref, out_ref = refs
    else:
        mask_pos_ref, mask_len_ref, spec_ref, out_ref = refs
    b = pl.program_id(0)
    t = pl.program_id(1)
    rows, freq = spec_ref.shape

    hit = None
    for m in range(num_mask):
        pos = mask_pos_ref[b, m]
        ln = mask_len_ref[b, m]
        if dim == 1:   # time rows of this tile: [t*rows, (t+1)*rows)
            h = jnp.logical_and(pos < (t + 1) * rows, pos + ln > t * rows)
        else:          # freq mask touches every tile unless all lengths are 0
            h = ln > 0
        hit = h if hit is None else jnp.logical_or(hit, h)

    @pl.when(jnp.logical_not(hit))
    def _copy():
        out_ref[...] = spec_ref[...]

    @pl.when(hit)
    def _masked():
        if dim == 1:   # (rows, 1), broadcast over freq lanes
            aran = t * rows + lax.broadcasted_iota(jnp.int32, (rows, 1), 0)
        else:          # (1, F), broadcast over time rows
            aran = lax.broadcasted_iota(jnp.int32, (1, freq), 1)
        mask = None
        for m in range(num_mask):
            pos = mask_pos_ref[b, m]
            cur = jnp.logical_and(pos <= aran, aran < pos + mask_len_ref[b, m])
            mask = cur if mask is None else jnp.logical_or(mask, cur)
        x = spec_ref[...]
        fill = fill_ref[0] if static_fill is None else static_fill
        out_ref[...] = jnp.where(mask, jnp.asarray(fill, x.dtype), x)


# ---------------------------------------------------------------------------
# Tiling helpers
# ---------------------------------------------------------------------------
def _device_budget():
    """(per-VMEM-buffer budget, vmem_limit_bytes) — generation aware.

    4 buffers are live (in + out, double-buffered).  v5e: 16 MiB scoped default;
    v6e: 128 MiB VMEM; v7x: 64 MiB physical / 32 MiB scoped default.
    """
    kind = ""
    try:
        kind = jax.devices()[0].device_kind.lower()
    except Exception:
        pass
    if "v5e" in kind or ("v5" in kind and "lite" in kind):
        return (5 * 1024 * 1024) // 2, 16 * 1024 * 1024     # 2.5 MiB / buffer
    return 4 * 1024 * 1024, 32 * 1024 * 1024                 # 4 MiB / buffer


def _pick_row_tile(R, row_bytes, budget_bytes, prefer_split=False):
    """Pick a row-tile size for a (R, lanes) slab.

    Returns (tile_rows, num_row_tiles, ragged).  Prefers a multiple-of-8 divisor
    of R under the VMEM budget; if R itself fits it is used (full-dim blocks are
    always layout-legal); otherwise the tile is capped at the budget and the grid
    uses ceiling division with a ragged (Pallas-masked) last block.
    """
    budget_rows = max(8, budget_bytes // max(1, row_bytes))

    def search(cap):
        c = (min(R, cap) // 8) * 8
        while c >= 8:
            if R % c == 0:
                return c
            c -= 8
        return None

    if prefer_split and R >= 16:   # keep >=2 row tiles so both v7x cores get work
        t = search(min(budget_rows, max(8, R // 2)))
        if t is not None and t < R:
            return t, R // t, False
    t = search(budget_rows)
    if t is not None:
        return t, R // t, False
    if R <= budget_rows:
        return R, 1, False
    tR = max(8, (min(R, budget_rows) // 8) * 8)
    return tR, (R + tR - 1) // tR, True


def _flat_lane_width_time(T, F):
    """Largest multiple-of-128 lane width dividing T*F (prefer row count % 8 == 0)."""
    n = T * F
    best = None
    for c in (1024, 512, 256, 128):
        if n % c == 0:
            if best is None:
                best = c
            if (n // c) % 8 == 0:
                return c
    return best


def _flat_lane_width_freq(T, F):
    """Smallest k with k*F % 128 == 0 (scaled up while T % k == 0); None if impossible."""
    k0 = 128 // math.gcd(F, 128)
    best = None
    for mult in (8, 4, 2, 1):
        k = k0 * mult
        if k <= T and T % k == 0 and k * F <= 4096:
            if best is None:
                best = k
            if (T // k) % 8 == 0:
                return k
    return best


# ---------------------------------------------------------------------------
# Wrapper
# ---------------------------------------------------------------------------
def mask_along_axis_pallas(key, spec, mask_width_range, dim=1, num_mask=2,
                           replace_with_zero=True):
    """Pallas equivalent of espnet2 mask_along_axis for (B, T, F) (or 4-D) spec."""
    org_shape = spec.shape
    if spec.ndim == 4:
        spec = spec.reshape(-1, spec.shape[2], spec.shape[3])
    assert spec.ndim == 3
    B, T, F = spec.shape
    D = spec.shape[dim]
    itemsize = spec.dtype.itemsize

    k_len, k_pos = jax.random.split(key)
    # torch.randint(low, high, (B, num_mask)) semantics: uniform ints in [low, high)
    mask_length = jax.random.randint(
        k_len, (B, num_mask), mask_width_range[0], mask_width_range[1],
        dtype=jnp.int32)
    max_pos = jnp.maximum(1, D - jnp.max(mask_length))   # global max, as in PyTorch
    mask_pos = jax.random.randint(
        k_pos, (B, num_mask), 0, max_pos, dtype=jnp.int32)

    if replace_with_zero:
        static_fill = 0.0
        scalar_ops = (mask_pos, mask_length)
    else:
        # TODO(synk): fuse the mean into a small Pallas reduction to avoid this
        # extra full HBM pass on the non-default path.
        static_fill = None
        fill = jnp.mean(spec).reshape(1).astype(jnp.float32)
        scalar_ops = (mask_pos, mask_length, fill)
    nsp = len(scalar_ops)
    alias = {nsp: 0}   # spec is the first non-prefetch operand -> reuse its HBM buffer

    budget, vmem_limit = _device_budget()
    cparams = pltpu.CompilerParams(
        dimension_semantics=("parallel", "parallel"),
        vmem_limit_bytes=vmem_limit)
    cost = pl.CostEstimate(flops=0, transcendentals=0,
                           bytes_accessed=2 * spec.size * itemsize)

    if dim == 1:
        lane_w = _flat_lane_width_time(T, F)
    else:
        k = _flat_lane_width_freq(T, F)
        lane_w = None if k is None else k * F

    if lane_w is not None:
        # ---- lane-dense flattened path (full-width vst stores) ----
        R = (T * F) // lane_w
        tR, n_rt, _ragged = _pick_row_tile(R, lane_w * itemsize, budget,
                                           prefer_split=(B == 1))
        specf = spec.reshape(B, R, lane_w)
        slab_spec = pl.BlockSpec((pl.Squeezed(), tR, lane_w),
                                 lambda b, t, *_: (b, t, 0))
        if dim == 1:
            kernel = functools.partial(_time_flat_kernel, num_mask, F, static_fill)
            in_specs = [slab_spec]
            operands = scalar_ops + (specf,)
        else:
            fidx = (jnp.arange(lane_w, dtype=jnp.int32) % F).reshape(1, lane_w)
            kernel = functools.partial(_freq_flat_kernel, num_mask, static_fill)
            in_specs = [slab_spec,
                        pl.BlockSpec((1, lane_w), lambda b, t, *_: (0, 0))]
            operands = scalar_ops + (specf, fidx)
        out = pl.pallas_call(
            kernel,
            out_shape=jax.ShapeDtypeStruct((B, R, lane_w), spec.dtype),
            grid_spec=pltpu.PrefetchScalarGridSpec(
                num_scalar_prefetch=nsp,
                grid=(B, n_rt),
                in_specs=in_specs,
                out_specs=pl.BlockSpec((pl.Squeezed(), tR, lane_w),
                                       lambda b, t, *_: (b, t, 0)),
            ),
            compiler_params=cparams,
            cost_estimate=cost,
            input_output_aliases=alias,
        )(*operands)
        out = out.reshape(B, T, F)
    else:
        # ---- (T, F)-tiled fallback (no 128-aligned flat reshape exists) ----
        tT, n_tt, _ragged = _pick_row_tile(T, F * itemsize, budget,
                                           prefer_split=(B == 1))
        kernel = functools.partial(_tf_kernel, num_mask, dim, static_fill)
        operands = scalar_ops + (spec,)
        out = pl.pallas_call(
            kernel,
            out_shape=jax.ShapeDtypeStruct((B, T, F), spec.dtype),
            grid_spec=pltpu.PrefetchScalarGridSpec(
                num_scalar_prefetch=nsp,
                grid=(B, n_tt),
                in_specs=[pl.BlockSpec((pl.Squeezed(), tT, F),
                                       lambda b, t, *_: (b, t, 0))],
                out_specs=pl.BlockSpec((pl.Squeezed(), tT, F),
                                       lambda b, t, *_: (b, t, 0)),
            ),
            compiler_params=cparams,
            cost_estimate=cost,
            input_output_aliases=alias,
        )(*operands)

    out = out.reshape(org_shape)
    return out, mask_pos, mask_length


class MaskAlongAxisVariableMaxWidth:
    """JAX/Pallas port. max_width = floor(max_width_ratio * seq_len)."""

    def __init__(self, mask_width_ratio_range=(0.0, 0.05), num_mask=2,
                 dim="time", replace_with_zero=True):
        if isinstance(mask_width_ratio_range, float):
            mask_width_ratio_range = (0.0, mask_width_ratio_range)
        assert len(mask_width_ratio_range) == 2
        assert mask_width_ratio_range[1] > mask_width_ratio_range[0]
        if isinstance(dim, str):
            dim = {"time": 1, "freq": 2}[dim]
        self.mask_width_ratio_range = mask_width_ratio_range
        self.num_mask = num_mask
        self.dim = dim
        self.replace_with_zero = replace_with_zero

    def __call__(self, key, spec, spec_lengths=None):
        # NOTE: for 4-D inputs this uses the pre-reshape axis, mirroring espnet.
        max_seq_len = spec.shape[self.dim]
        min_mask_width = max(0, math.floor(max_seq_len * self.mask_width_ratio_range[0]))
        max_mask_width = min(max_seq_len,
                             math.floor(max_seq_len * self.mask_width_ratio_range[1]))
        if max_mask_width > min_mask_width:
            out, mask_pos, mask_length = mask_along_axis_pallas(
                key, spec, (min_mask_width, max_mask_width),
                dim=self.dim, num_mask=self.num_mask,
                replace_with_zero=self.replace_with_zero)
            return (out, spec_lengths), (mask_pos, mask_length)
        return (spec, spec_lengths), (None, None)


# ---------------------------------------------------------------------------
# Pure-JAX reference (mirrors the PyTorch mask_along_axis math)
# ---------------------------------------------------------------------------
def _reference_mask(spec, mask_pos, mask_length, dim, replace_with_zero):
    D = spec.shape[dim]
    aran = jnp.arange(D)[None, None, :]
    mask = (mask_pos[..., None] <= aran) & (aran < mask_pos[..., None] + mask_length[..., None])
    mask = jnp.any(mask, axis=1)                       # (B, D)
    mask = mask[:, :, None] if dim == 1 else mask[:, None, :]
    value = 0.0 if replace_with_zero else jnp.mean(spec)
    return jnp.where(mask, value, spec)


if __name__ == "__main__":
    key = jax.random.PRNGKey(0)
    ks = jax.random.split(key, 6)

    # 1) Default config: time masking, zero fill -> lane-dense flat kernel.
    B, T, F = 2, 128, 32
    spec = jax.random.normal(ks[0], (B, T, F), dtype=jnp.float32)
    spec_lengths = jnp.full((B,), T, dtype=jnp.int32)
    mod_t = MaskAlongAxisVariableMaxWidth(
        mask_width_ratio_range=(0.0, 0.05), num_mask=2, dim="time",
        replace_with_zero=True)
    (out_t, _), (pos_t, len_t) = mod_t(ks[1], spec, spec_lengths)
    out_t = jax.block_until_ready(out_t)
    assert out_t.shape == spec.shape and out_t.dtype == spec.dtype
    ref_t = _reference_mask(spec, pos_t, len_t, dim=1, replace_with_zero=True)
    assert jnp.allclose(out_t, ref_t), "time-mask (flat) mismatch vs reference"

    # 2) Freq masking with mean fill -> lane-dense periodic-freq kernel.
    mod_f = MaskAlongAxisVariableMaxWidth(
        mask_width_ratio_range=(0.0, 0.1), num_mask=2, dim="freq",
        replace_with_zero=False)
    (out_f, _), (pos_f, len_f) = mod_f(ks[2], spec, spec_lengths)
    out_f = jax.block_until_ready(out_f)
    assert out_f.shape == spec.shape and out_f.dtype == spec.dtype
    ref_f = _reference_mask(spec, pos_f, len_f, dim=2, replace_with_zero=False)
    assert jnp.allclose(out_f, ref_f), "freq-mask (flat) mismatch vs reference"

    # 3) T*F not a multiple of 128 -> (T, F)-tiled fallback kernel, time masking.
    B2, T2, F2 = 2, 100, 30
    spec2 = jax.random.normal(ks[3], (B2, T2, F2), dtype=jnp.float32)
    lens2 = jnp.full((B2,), T2, dtype=jnp.int32)
    mod_t2 = MaskAlongAxisVariableMaxWidth(
        mask_width_ratio_range=(0.0, 0.3), num_mask=2, dim="time",
        replace_with_zero=True)
    (out_t2, _), (pos_t2, len_t2) = mod_t2(ks[4], spec2, lens2)
    out_t2 = jax.block_until_ready(out_t2)
    ref_t2 = _reference_mask(spec2, pos_t2, len_t2, dim=1, replace_with_zero=True)
    assert jnp.allclose(out_t2, ref_t2), "time-mask (fallback) mismatch vs reference"

    # 4) Same awkward shape, freq masking -> fallback kernel, freq branch.
    mod_f2 = MaskAlongAxisVariableMaxWidth(
        mask_width_ratio_range=(0.0, 0.2), num_mask=2, dim="freq",
        replace_with_zero=True)
    (out_f2, _), (pos_f2, len_f2) = mod_f2(ks[5], spec2, lens2)
    out_f2 = jax.block_until_ready(out_f2)
    ref_f2 = _reference_mask(spec2, pos_f2, len_f2, dim=2, replace_with_zero=True)
    assert jnp.allclose(out_f2, ref_f2), "freq-mask (fallback) mismatch vs reference"

    print("KERNEL_OK")
</pallas_src>

<mosaic_0001>
module attributes {stable_mosaic.version = 11 : i64} {
  func.func @_time_flat_kernel(%arg0: i32, %arg1: i32, %arg2: memref<2x2xi32, #tpu.memory_space<smem>>, %arg3: memref<2x2xi32, #tpu.memory_space<smem>>, %arg4: memref<1x8x512xf32, #tpu.memory_space<vmem>>, %arg5: memref<1x8x512xf32, #tpu.memory_space<vmem>>) attributes {dimension_semantics = [#tpu.dimension_semantics<parallel>, #tpu.dimension_semantics<parallel>], iteration_bounds = array<i64: 2, 1>, scalar_prefetch = 2 : i64, scratch_operands = 0 : i64, tpu.core_type = #tpu.core_type<tc>, window_params = [{transform_indices = @transform_0, window_bounds = array<i64: 1, 8, 512>}, {transform_indices = @transform_1, window_bounds = array<i64: 1, 8, 512>}]} {
    %c4096_i32 = arith.constant 4096 : i32
    %0 = arith.muli %arg1, %c4096_i32 : i32
    %c4096_i32_0 = arith.constant 4096 : i32
    %1 = arith.addi %0, %c4096_i32_0 : i32
    %2 = arith.index_cast %arg0 : i32 to index
    %c0 = arith.constant 0 : index
    %3 = memref.load %arg2[%2, %c0] : memref<2x2xi32, #tpu.memory_space<smem>>
    %c32_i32 = arith.constant 32 : i32
    %4 = arith.muli %3, %c32_i32 : i32
    %5 = arith.index_cast %arg0 : i32 to index
    %c0_1 = arith.constant 0 : index
    %6 = memref.load %arg3[%5, %c0_1] : memref<2x2xi32, #tpu.memory_space<smem>>
    %c32_i32_2 = arith.constant 32 : i32
    %7 = arith.muli %6, %c32_i32_2 : i32
    %8 = arith.addi %4, %7 : i32
    %9 = arith.cmpi slt, %4, %1 : i32
    %10 = arith.cmpi sgt, %8, %0 : i32
    %11 = arith.andi %9, %10 : i1
    %12 = arith.index_cast %arg0 : i32 to index
    %c1 = arith.constant 1 : index
    %13 = memref.load %arg2[%12, %c1] : memref<2x2xi32, #tpu.memory_space<smem>>
    %c32_i32_3 = arith.constant 32 : i32
    %14 = arith.muli %13, %c32_i32_3 : i32
    %15 = arith.index_cast %arg0 : i32 to index
    %c1_4 = arith.constant 1 : index
    %16 = memref.load %arg3[%15, %c1_4] : memref<2x2xi32, #tpu.memory_space<smem>>
    %c32_i32_5 = arith.constant 32 : i32
    %17 = arith.muli %16, %c32_i32_5 : i32
    %18 = arith.addi %14, %17 : i32
    %19 = arith.cmpi slt, %14, %1 : i32
    %20 = arith.cmpi sgt, %18, %0 : i32
    %21 = arith.andi %19, %20 : i1
    %22 = arith.ori %11, %21 : i1
    %true = arith.constant true
    %23 = arith.xori %22, %true : i1
    %24 = arith.extui %23 : i1 to i32
    %c0_i32 = arith.constant 0 : i32
    %25 = arith.cmpi ne, %24, %c0_i32 : i32
    scf.if %25 {
      %c0_7 = arith.constant 0 : index
      %c0_8 = arith.constant 0 : index
      %c0_9 = arith.constant 0 : index
      %28 = vector.load %arg4[%c0_7, %c0_8, %c0_9] : memref<1x8x512xf32, #tpu.memory_space<vmem>>, vector<1x8x512xf32>
      %29 = vector.shape_cast %28 : vector<1x8x512xf32> to vector<8x512xf32>
      %c0_10 = arith.constant 0 : index
      %c0_11 = arith.constant 0 : index
      %c0_12 = arith.constant 0 : index
      %30 = vector.load %arg5[%c0_10, %c0_11, %c0_12] : memref<1x8x512xf32, #tpu.memory_space<vmem>>, vector<1x8x512xf32>
      %31 = vector.shape_cast %30 : vector<1x8x512xf32> to vector<8x512xf32>
      %32 = vector.shape_cast %29 : vector<8x512xf32> to vector<1x8x512xf32>
      tpu.vector_store %arg5[%c0_10, %c0_11, %c0_12], %32 {strides = array<i32>} : memref<1x8x512xf32, #tpu.memory_space<vmem>>, vector<1x8x512xf32>,
    } else {
    }
    %26 = arith.extui %22 : i1 to i32
    %c0_i32_6 = arith.constant 0 : i32
    %27 = arith.cmpi ne, %26, %c0_i32_6 : i32
    scf.if %27 {
      %28 = tpu.iota {dimensions = array<i32: 1>} : vector<1x512xi32>
      %29 = tpu.iota {dimensions = array<i32: 0>} : vector<8x1xi32>
      %c512_i32 = arith.constant 512 : i32
      %30 = vector.broadcast %c512_i32 : i32 to vector<8x1xi32>
      %31 = arith.muli %29, %30 : vector<8x1xi32>
      %32 = vector.broadcast %0 : i32 to vector<8x1xi32>
      %33 = arith.addi %32, %31 : vector<8x1xi32>
      %34 = vector.broadcast %4 : i32 to vector<8x1xi32>
      %35 = arith.subi %34, %33 : vector<8x1xi32>
      %36 = vector.broadcast %8 : i32 to vector<8x1xi32>
      %37 = arith.subi %36, %33 : vector<8x1xi32>
      %38 = vector.broadcast %35 : vector<8x1xi32> to vector<8x512xi32>
      %39 = vector.broadcast %28 : vector<1x512xi32> to vector<8x512xi32>
      %40 = arith.cmpi sle, %38, %39 : vector<8x512xi32>
      %41 = vector.broadcast %28 : vector<1x512xi32> to vector<8x512xi32>
      %42 = vector.broadcast %37 : vector<8x1xi32> to vector<8x512xi32>
      %43 = arith.cmpi slt, %41, %42 : vector<8x512xi32>
      %44 = arith.andi %40, %43 : vector<8x512xi1>
      %45 = vector.broadcast %14 : i32 to vector<8x1xi32>
      %46 = arith.subi %45, %33 : vector<8x1xi32>
      %47 = vector.broadcast %18 : i32 to vector<8x1xi32>
      %48 = arith.subi %47, %33 : vector<8x1xi32>
      %49 = vector.broadcast %46 : vector<8x1xi32> to vector<8x512xi32>
      %50 = vector.broadcast %28 : vector<1x512xi32> to vector<8x512xi32>
      %51 = arith.cmpi sle, %49, %50 : vector<8x512xi32>
      %52 = vector.broadcast %28 : vector<1x512xi32> to vector<8x512xi32>
      %53 = vector.broadcast %48 : vector<8x1xi32> to vector<8x512xi32>
      %54 = arith.cmpi slt, %52, %53 : vector<8x512xi32>
      %55 = arith.andi %51, %54 : vector<8x512xi1>
      %56 = arith.ori %44, %55 : vector<8x512xi1>
      %c0_7 = arith.constant 0 : index
      %c0_8 = arith.constant 0 : index
      %c0_9 = arith.constant 0 : index
      %57 = vector.load %arg4[%c0_7, %c0_8, %c0_9] : memref<1x8x512xf32, #tpu.memory_space<vmem>>, vector<1x8x512xf32>
      %58 = vector.shape_cast %57 : vector<1x8x512xf32> to vector<8x512xf32>
      %cst = arith.constant 0.000000e+00 : f32
      %59 = vector.broadcast %cst : f32 to vector<8x512xf32>
      %60 = arith.select %56, %59, %58 : vector<8x512xi1>, vector<8x512xf32>
      %c0_10 = arith.constant 0 : index
      %c0_11 = arith.constant 0 : index
      %c0_12 = arith.constant 0 : index
      %61 = vector.load %arg5[%c0_10, %c0_11, %c0_12] : memref<1x8x512xf32, #tpu.memory_space<vmem>>, vector<1x8x512xf32>
      %62 = vector.shape_cast %61 : vector<1x8x512xf32> to vector<8x512xf32>
      %63 = vector.shape_cast %60 : vector<8x512xf32> to vector<1x8x512xf32>
      tpu.vector_store %arg5[%c0_10, %c0_11, %c0_12], %63 {strides = array<i32>} : memref<1x8x512xf32, #tpu.memory_space<vmem>>, vector<1x8x512xf32>,
    } else {
    }
    return
  }
  func.func @transform_0(%arg0: i32, %arg1: i32, %arg2: memref<2x2xi32, #tpu.memory_space<smem>>, %arg3: memref<2x2xi32, #tpu.memory_space<smem>>) -> (i32, i32, i32) {
    %c0_i32 = arith.constant 0 : i32
    %c0_i32_0 = arith.constant 0 : i32
    return %arg0, %arg1, %c0_i32 : i32, i32, i32
  }
  func.func @transform_1(%arg0: i32, %arg1: i32, %arg2: memref<2x2xi32, #tpu.memory_space<smem>>, %arg3: memref<2x2xi32, #tpu.memory_space<smem>>) -> (i32, i32, i32) {
    %c0_i32 = arith.constant 0 : i32
    %c0_i32_0 = arith.constant 0 : i32
    return %arg0, %arg1, %c0_i32 : i32, i32, i32
  }
}

</mosaic_0001>

<llo_original>
// kernel: tpu_custom_call.1
$region0: #{tpu_custom_call.1}
  #allocation0 [shape = 'u32[]', space=smem, size = 0x4, offset = 0x4, fixed_abs, tag = 'smem constant byte address 0x4 - core index']
  #allocation1 [shape = 'u32[72,128]{1,0:T(1,128)}', space=vmem, size = 0x9000, scoped, tag = 'internal scratch']
  #allocation2 [shape = 's32[1]{0}', space=sflag, size = 0x4, scoped, tag = 'scoped memory for tpu_custom_call.1']
  #allocation3 [shape = 'u8[1024]{0}', space=smem, size = 0x400, scoped, tag = 'prefetched SMEM operand 0']
  #allocation4 [shape = 'u8[1024]{0}', space=smem, size = 0x400, scoped, tag = 'prefetched SMEM operand 1']
  %s0 = inlined_call_operand.vmem [shape: s32[2,2], index: 0, kind: input, shape index: {}]
  %s1 = inlined_call_operand.vmem [shape: s32[2,2], index: 1, kind: input, shape index: {}]
  %s2 = inlined_call_operand.hbm [shape: f32[2,8,512], index: 2, kind: input, shape index: {}, may-alias: {2,3}]
  %s3 = inlined_call_operand.hbm [shape: f32[2,8,512], index: 3, kind: output, shape index: {}, may-alias: {2,3}]
  %s4 = sld [smem:[#allocation0]]
  $region49: #{tpu_custom_call.1} parent=0
    _
  %s6 = ssub.s32 1, %s4
  %s7 = scalar_select 0, %s6, %s4
  %s9 = sshll.u32 %s0, 4
  %s10 = int_to_ptr.vmem [resolvable:$true] %s9
  %12 = dma.vmem_to_smem %s10, 32, [#allocation3], [#allocation2]
  %s14 = sshll.u32 %s1, 4
  %s15 = int_to_ptr.vmem [resolvable:$true] %s14
  %17 = dma.vmem_to_smem %s15, 32, [#allocation4], [#allocation2]
  %19 = dma.done [#allocation2], 64
  %20 = sfence
  $region1: #{tpu_custom_call.1} parent=0
    #allocation5 [shape = 'u8[32768]{0}', space=vmem, size = 0x8000, scoped, tag = 'input window, operand 2']
    #allocation6 [shape = 's32[2]{0}', space=sflag, size = 0x8, scoped, tag = 'scoped memory for tpu_custom_call.1']
    #allocation7 [shape = 's32[2]{0}', space=sflag, size = 0x8, scoped, tag = 'scoped memory for tpu_custom_call.1']
    #allocation8 [shape = 'u8[32768]{0}', space=vmem, size = 0x8000, scoped, tag = 'output window, operand 0']
    %21 = vsyncpa [#allocation6], 0
    %s22 = scalar_lea.sflag [#allocation6], 1
    %23 = vsyncpa %s22, 0
    %24 = vsyncpa [#allocation7], 0
    %s25 = scalar_lea.sflag [#allocation7], 1
    %26 = vsyncpa %s25, 0
    loop: start=0, step=1, limit=4
    $region2: #{tpu_custom_call.1} parent=1 // loop_pre_header
      _
    $region3: #{tpu_custom_call.1} parent=1 // loop_header
      %s28 = sphi 0, %s32
      %p29 = scmp.ge.s32.totalorder %s28, 4
      %s35 = sphi 0, %s47
      %s36 = sphi 0, %s43
      %s37 = sphi 0, %s35
      %s38 = sphi 0, %s36
      %s39 = sphi 0, %s37
      %s40 = sphi 0, %s38
      %s52 = sphi 0, %s54
      %s55 = sphi 0, %s52
      %s56 = sphi 0, %s55
      %s72 = sphi 0, %s56
      %s80 = sphi 0, %s82
      %s83 = sphi 0, %s80
      %s84 = sphi 0, %s83
      %s100 = sphi 0, %s84
    $region4: #{tpu_custom_call.1} parent=1 // loop_header_branch
      %31 = sbr.rel (%p29) target = $region8
    $region5: #{tpu_custom_call.1} parent=1 // loop_body
      %s33 = ssub.s32 %s28, 1
      %s34 = ssub.s32 %s28, 2
      %s41 = sadd.s32 1, %s36
      %p42 = scmp.ge.s32.totalorder %s41, 1
      %s43 = scalar_select %p42, 0, %s41
      %s44 = sadd.s32 1, %s35
      %s45 = scalar_select %p42, %s44, %s35
      %p46 = scmp.ge.s32.totalorder %s45, 2
      %s47 = scalar_select %p46, 0, %s45
      %s48 = ssub.s32 %s35, %s47
      %s49 = ssub.s32 %s36, %s43
      %s50 = sor.u32 %s48, %s49
      %p51 = scmp.eq.s32.totalorder %s50, 0
      %s53 = sadd.s32 %s52, 1
      %s54 = scalar_select %p51, %s52, %s53
      %p57 = pneg %p51
      %p58 = scmp.eq.s32.totalorder %s28, 1
      %p59 = por %p57, %p58
      %p60 = scmp.ne.s32.totalorder %s52, %s55
      %p61 = scmp.eq.s32.totalorder %s28, 0
      %p62 = por %p60, %p61
      %p63 = scmp.ne.s32.totalorder %s52, %s55
      %p64 = scmp.eq.s32.totalorder %s33, 1
      %p65 = por %p63, %p64
      %p66 = scmp.ne.s32.totalorder %s55, %s56
      %p67 = scmp.eq.s32.totalorder %s33, 0
      %p68 = por %p66, %p67
      %p69 = scmp.ne.s32.totalorder %s55, %s56
      %p70 = scmp.eq.s32.totalorder %s34, 1
      %p71 = por %p69, %p70
      %p73 = scmp.ne.s32.totalorder %s56, %s72
      %p74 = scmp.eq.s32.totalorder %s34, 0
      %p75 = por %p73, %p74
      %s76 = ssub.s32 %s35, %s47
      %s77 = ssub.s32 %s36, %s43
      %s78 = sor.u32 %s76, %s77
      %p79 = scmp.eq.s32.totalorder %s78, 0
      %s81 = sadd.s32 %s80, 1
      %s82 = scalar_select %p79, %s80, %s81
      %p85 = pneg %p79
      %p86 = scmp.eq.s32.totalorder %s28, 1
      %p87 = por %p85, %p86
      %p88 = scmp.ne.s32.totalorder %s80, %s83
      %p89 = scmp.eq.s32.totalorder %s28, 0
      %p90 = por %p88, %p89
      %p91 = scmp.ne.s32.totalorder %s80, %s83
      %p92 = scmp.eq.s32.totalorder %s33, 1
      %p93 = por %p91, %p92
      %p94 = scmp.ne.s32.totalorder %s83, %s84
      %p95 = scmp.eq.s32.totalorder %s33, 0
      %p96 = por %p94, %p95
      %p97 = scmp.ne.s32.totalorder %s83, %s84
      %p98 = scmp.eq.s32.totalorder %s34, 1
      %p99 = por %p97, %p98
      %p101 = scmp.ne.s32.totalorder %s84, %s100
      %p102 = scmp.eq.s32.totalorder %s34, 0
      %p103 = por %p101, %p102
      %p104 = scmp.le.s32.totalorder 1, %s28
      %p105 = scmp.lt.s32.totalorder %s28, 3
      %p106 = pnand %p104, %p105
      %p107 = pneg %p106
      // Predicated region
      $region9: #{tpu_custom_call.1} parent=5 // pred_check
        _
      $region10: #{tpu_custom_call.1} parent=5 // pred_check_branch
        %109 = sbr.rel (%p106) target = $region12
      $region11: #{tpu_custom_call.1} parent=5 // pred_region
        %s110 = ssub.s32 %s28, 1
      $region12: #{tpu_custom_call.1} parent=5 // pred_fallthru
        _
      %p111 = scmp.lt.s32.totalorder %s28, 2
      // Predicated region
      $region13: #{tpu_custom_call.1} parent=5 // pred_check
        %p112 = pneg %p111
      $region14: #{tpu_custom_call.1} parent=5 // pred_check_branch
        %114 = sbr.rel (%p112) target = $region16
      $region15: #{tpu_custom_call.1} parent=5 // pred_region
        // Predicated region
        $region17: #{tpu_custom_call.1} parent=15 // pred_check
          %p115 = pneg %p62
        $region18: #{tpu_custom_call.1} parent=15 // pred_check_branch
          %117 = sbr.rel (%p115) target = $region20
        $region19: #{tpu_custom_call.1} parent=15 // pred_region
          %s118 = sand.u32 %s52, 1
          %s119 = scalar_lea.sflag [#allocation6], %s118
          %s120 = sand.u32 %s52, 1
          %s121 = smul.addr %s120, 32
          %s122 = scalar_lea.vmem [#allocation5], %s121
          %124 = vsyncadd %s119, 0
          %s125 = smul.addr %s36, 4
          %s126 = smul.addr %s35, 4
          %s127 = sadd.s32 %s125, %s126
          %s128 = smul.addr %s127, 8
          %s129 = scalar_lea.hbm %s2, %s128
          %s131 = sshll.u32 %s129, 4
          %s132 = int_to_ptr.hbm [resolvable:$true] %s131
          %s133 = sshll.u32 %s122, 4
          %s134 = int_to_ptr.vmem [resolvable:$true] %s133
          %136 = dma.hbm_to_vmem [thread:$0]  %s132, 512, %s134, %s119
        $region20: #{tpu_custom_call.1} parent=15 // pred_fallthru
          _
      $region16: #{tpu_custom_call.1} parent=5 // pred_fallthru
        _
      %p137 = scmp.le.s32.totalorder 1, %s28
      %p138 = scmp.lt.s32.totalorder %s28, 3
      %p139 = pnand %p137, %p138
      %p140 = pneg %p139
      // Predicated region
      $region21: #{tpu_custom_call.1} parent=5 // pred_check
        _
      $region22: #{tpu_custom_call.1} parent=5 // pred_check_branch
        %142 = sbr.rel (%p139) target = $region24
      $region23: #{tpu_custom_call.1} parent=5 // pred_region
        %s143 = ssub.s32 %s28, 1
        %s144 = sand.u32 %s55, 1
        %s145 = scalar_lea.sflag [#allocation6], %s144
        %s146 = sand.u32 %s55, 1
        %s147 = smul.addr %s146, 32
        %s148 = scalar_lea.vmem [#allocation5], %s147
        // Predicated region
        $region25: #{tpu_custom_call.1} parent=23 // pred_check
          %p149 = pneg %p68
        $region26: #{tpu_custom_call.1} parent=23 // pred_check_branch
          %151 = sbr.rel (%p149) target = $region28
        $region27: #{tpu_custom_call.1} parent=23 // pred_region
          %153 = dma.done %s145, 512
        $region28: #{tpu_custom_call.1} parent=23 // pred_fallthru
          _
        %s154 = sand.u32 %s55, 1
        %s155 = scalar_lea.sflag [#allocation6], %s154
        %s156 = sand.u32 %s55, 1
        %s157 = smul.addr %s156, 32
        %s158 = scalar_lea.vmem [#allocation5], %s157
        %p159 = pneg %p68
        %p160 = pneg %p65
        %p161 = pneg %p96
        %p162 = pneg %p93
        %s163 = sand.u32 %s83, 1
        %s164 = scalar_lea.sflag [#allocation7], %s163
        %s165 = sand.u32 %s83, 1
        %s166 = smul.addr %s165, 32
        %s167 = scalar_lea.vmem [#allocation8], %s166
        %s168 = smul.u32 %s38, 4096
        %s169 = sadd.s32 %s168, 4096
        %s170 = smul.u32 %s37, 128
        %s171 = sld [smem:[#allocation3 + %s170]]
        %s172 = smul.u32 %s171, 32
        %s173 = sld [smem:[#allocation4 + %s170]]
        %s174 = smul.u32 %s173, 32
        %s175 = sadd.s32 %s172, %s174
        %p176 = scmp.lt.s32.totalorder %s172, %s169
        %p177 = scmp.gt.s32.totalorder %s175, %s168
        %p178 = pnand %p176, %p177
        %p179 = pneg %p178
        %s180 = sadd.s32 %s170, 1
        %s181 = sld [smem:[#allocation3 + %s180]]
        %s182 = smul.u32 %s181, 32
        %s183 = sld [smem:[#allocation4 + %s180]]
        %s184 = smul.u32 %s183, 32
        %s185 = sadd.s32 %s182, %s184
        %p186 = scmp.lt.s32.totalorder %s182, %s169
        %p187 = scmp.gt.s32.totalorder %s185, %s168
        %p188 = pnand %p186, %p187
        %p189 = pneg %p188
        %p190 = por %p179, %p189
        // Predicated region
        $region29: #{tpu_custom_call.1} parent=23 // pred_check
          %p191 = pneg %p190
        $region30: #{tpu_custom_call.1} parent=23 // pred_check_branch
          %193 = sbr.rel (%p191) target = $region32
        $region31: #{tpu_custom_call.1} parent=23 // pred_region
          %v194 = vlaneseq
          %v195 = vand.u32 %v194, 127
          %v196 = vadd.s32 %v195, 128
          %v197 = vadd.s32 %v195, 256
          %v198 = vadd.s32 %v195, 384
          %v199 = vlaneseq
          %v200 = vshrl.u32 %v199, 7
          %v201 = vmul.u32 %v200, 512
          %v202 = vstv %s168
          %v203 = vadd.s32 %v202, %v201
          %v204 = vstv %s172
          %v205 = vsub.s32 %v204, %v203
          %v206 = vstv %s175
          %v207 = vsub.s32 %v206, %v203
          %vm208 = vcmp.le.s32.totalorder %v205, %v195
          %vm209 = vcmp.le.s32.totalorder %v205, %v196
          %vm210 = vcmp.le.s32.totalorder %v205, %v197
          %vm211 = vcmp.le.s32.totalorder %v205, %v198
          %vm212 = vcmp.lt.s32.totalorder %v195, %v207
          %vm213 = vcmp.lt.s32.totalorder %v196, %v207
          %vm214 = vcmp.lt.s32.totalorder %v197, %v207
          %vm215 = vcmp.lt.s32.totalorder %v198, %v207
          %vm216 = vmand %vm208, %vm212
          %vm217 = vmand %vm209, %vm213
          %vm218 = vmand %vm210, %vm214
          %vm219 = vmand %vm211, %vm215
          %v220 = vstv %s182
          %v221 = vsub.s32 %v220, %v203
          %v222 = vstv %s185
          %v223 = vsub.s32 %v222, %v203
          %vm224 = vcmp.le.s32.totalorder %v221, %v195
          %vm225 = vcmp.le.s32.totalorder %v221, %v196
          %vm226 = vcmp.le.s32.totalorder %v221, %v197
          %vm227 = vcmp.le.s32.totalorder %v221, %v198
          %vm228 = vcmp.lt.s32.totalorder %v195, %v223
          %vm229 = vcmp.lt.s32.totalorder %v196, %v223
          %vm230 = vcmp.lt.s32.totalorder %v197, %v223
          %vm231 = vcmp.lt.s32.totalorder %v198, %v223
          %vm232 = vmand %vm224, %vm228
          %vm233 = vmand %vm225, %vm229
          %vm234 = vmand %vm226, %vm230
          %vm235 = vmand %vm227, %vm231
          %vm236 = vmor %vm216, %vm232
          %vm237 = vmor %vm217, %vm233
          %vm238 = vmor %vm218, %vm234
          %vm239 = vmor %vm219, %vm235
          %v240 = vld [vmem:[%s148] sm:$0xff]
          %v241 = vld [vmem:[%s148 + $0x8] sm:$0xff]
          %v242 = vld [vmem:[%s148 + $0x10] sm:$0xff]
          %v243 = vld [vmem:[%s148 + $0x18] sm:$0xff]
          %v244 = vsel %vm236, 0.0, %v240
          %v245 = vsel %vm237, 0.0, %v241
          %v246 = vsel %vm238, 0.0, %v242
          %v247 = vsel %vm239, 0.0, %v243
          %248 = vst [vmem:[%s167] sm:$0xff] %v244
          %249 = vst [vmem:[%s167 + $0x8] sm:$0xff] %v245
          %250 = vst [vmem:[%s167 + $0x10] sm:$0xff] %v246
          %251 = vst [vmem:[%s167 + $0x18] sm:$0xff] %v247
        $region32: #{tpu_custom_call.1} parent=23 // pred_fallthru
          _
        %p252 = pneg %p190
        // Predicated region
        $region33: #{tpu_custom_call.1} parent=23 // pred_check
          _
        $region34: #{tpu_custom_call.1} parent=23 // pred_check_branch
          %254 = sbr.rel (%p190) target = $region36
        $region35: #{tpu_custom_call.1} parent=23 // pred_region
          %v255 = vld [vmem:[%s148] sm:$0xff]
          %v256 = vld [vmem:[%s148 + $0x8] sm:$0xff]
          %v257 = vld [vmem:[%s148 + $0x10] sm:$0xff]
          %v258 = vld [vmem:[%s148 + $0x18] sm:$0xff]
          %259 = vst [vmem:[%s167] sm:$0xff] %v255
          %260 = vst [vmem:[%s167 + $0x8] sm:$0xff] %v256
          %261 = vst [vmem:[%s167 + $0x10] sm:$0xff] %v257
          %262 = vst [vmem:[%s167 + $0x18] sm:$0xff] %v258
        $region36: #{tpu_custom_call.1} parent=23 // pred_fallthru
          _
        %s263 = sand.u32 %s83, 1
        %s264 = scalar_lea.sflag [#allocation7], %s263
        %s265 = sand.u32 %s83, 1
        %s266 = smul.addr %s265, 32
        %s267 = scalar_lea.vmem [#allocation8], %s266
        // Predicated region
        $region37: #{tpu_custom_call.1} parent=23 // pred_check
          %p268 = pneg %p93
        $region38: #{tpu_custom_call.1} parent=23 // pred_check_branch
          %270 = sbr.rel (%p268) target = $region40
        $region39: #{tpu_custom_call.1} parent=23 // pred_region
          %272 = vsyncadd %s264, 0
          %s273 = smul.addr %s38, 4
          %s274 = smul.addr %s37, 4
          %s275 = sadd.s32 %s273, %s274
          %s276 = smul.addr %s275, 8
          %s277 = scalar_lea.hbm %s3, %s276
          %s279 = sshll.u32 %s267, 4
          %s280 = int_to_ptr.vmem [resolvable:$true] %s279
          %s281 = sshll.u32 %s277, 4
          %s282 = int_to_ptr.hbm [resolvable:$true] %s281
          %284 = dma.vmem_to_hbm [thread:$0]  %s280, 512, %s282, %s264
        $region40: #{tpu_custom_call.1} parent=23 // pred_fallthru
          _
      $region24: #{tpu_custom_call.1} parent=5 // pred_fallthru
        _
      %p285 = scmp.le.s32.totalorder 2, %s28
      // Predicated region
      $region41: #{tpu_custom_call.1} parent=5 // pred_check
        %p286 = pneg %p285
      $region42: #{tpu_custom_call.1} parent=5 // pred_check_branch
        %288 = sbr.rel (%p286) target = $region44
      $region43: #{tpu_custom_call.1} parent=5 // pred_region
        %s289 = ssub.s32 %s28, 2
        // Predicated region
        $region45: #{tpu_custom_call.1} parent=43 // pred_check
          %p290 = pneg %p99
        $region46: #{tpu_custom_call.1} parent=43 // pred_check_branch
          %292 = sbr.rel (%p290) target = $region48
        $region47: #{tpu_custom_call.1} parent=43 // pred_region
          %s293 = sand.u32 %s84, 1
          %s294 = scalar_lea.sflag [#allocation7], %s293
          %s295 = sand.u32 %s84, 1
          %s296 = smul.addr %s295, 32
          %s297 = scalar_lea.vmem [#allocation8], %s296
          %299 = dma.done %s294, 512
        $region48: #{tpu_custom_call.1} parent=43 // pred_fallthru
          _
      $region44: #{tpu_custom_call.1} parent=5 // pred_fallthru
        _
    $region6: #{tpu_custom_call.1} parent=1 // loop_footer
      %s32 = sadd.s32 1, %s28
    $region7: #{tpu_custom_call.1} parent=1 // loop_footer_branch
      %27 = sbr.rel target = $region3
    $region8: #{tpu_custom_call.1} parent=1 // loop_exit
      _
    %300 = vsyncpa [#allocation6], 1
    %s301 = scalar_lea.sflag [#allocation6], 1
    %302 = vsyncpa %s301, 1
    %303 = vsyncpa [#allocation7], 1
    %s304 = scalar_lea.sflag [#allocation7], 1
    %305 = vsyncpa %s304, 1

</llo_original>
